<compile_context>
chip_gen: v7x
topology: tpu7x:2x2x1
jax: 0.10.0
libtpu: 0.0.40
codegen_flags: <defaults>
</compile_context>

<pallas_src>
import functools

import jax
import jax.numpy as jnp
from jax.experimental import pallas as pl
from jax.experimental.pallas import tpu as pltpu


def _round_up(x, m):
    return (x + m - 1) // m * m


def _pad2d(a, shape):
    return jnp.pad(a, [(0, s - d) for d, s in zip(a.shape, shape)])


def _fused_mlp_kernel(*refs, n_layers):
    """refs = (x, w_0, b_0, ..., w_{n-1}, b_{n-1}, out).

    All operands are VMEM-resident blocks; hidden activations never leave the
    kernel. Weights may be f32 or bf16 (f32 MXU accumulation either way);
    biases / ReLU / sigmoid math stay f32 (v5e VPU has no bf16).
    """
    x_ref, o_ref = refs[0], refs[-1]
    wb = refs[1:-1]
    h = x_ref[...].astype(jnp.float32)
    for i in range(n_layers):
        w = wb[2 * i][...]
        b = wb[2 * i + 1][...]          # stored f32
        h = jnp.dot(h.astype(w.dtype), w, preferred_element_type=jnp.float32) + b
        h = jnp.maximum(h, 0.0)          # make_layers puts ReLU after EVERY Linear
    # sigmoid(h) == 0.5 * (1 + tanh(h/2)): single EUP transcendental, VPU-free.
    o_ref[...] = (0.5 * (1.0 + jnp.tanh(0.5 * h))).astype(o_ref.dtype)


def init_predict_net_params(key, neure_num):
    """Deterministic synthetic parameters. Shapes match nn.Linear(cfg[i-1], cfg[i]),
    stored as (in, out) -- transposed relative to torch's (out, in)."""
    params = []
    for i in range(1, len(neure_num)):
        din, dout = neure_num[i - 1], neure_num[i]
        key, kw, kb = jax.random.split(key, 3)
        w = jax.random.normal(kw, (din, dout), jnp.float32) * (1.0 / jnp.sqrt(din))
        b = jax.random.normal(kb, (1, dout), jnp.float32) * 0.01
        params.append((w, b))
    return params


def prepare_predict_net_params(params, weight_dtype=jnp.float32):
    """One-time parameter prep (hoisted out of the forward):
      * first weight keeps its true input dim (so x needs no per-call padding),
      * all output-feature dims zero-padded to multiples of 128 (lane-dense),
      * subsequent weights' K dims padded to match the lane-dense activations,
      * optional bf16 weight storage (halves weight DMA at scale).
    Zero pads are inert: padded bias lanes are 0, ReLU keeps them 0, padded K
    rows multiply those zeros. Padding is sliced off the final output."""
    dims = tuple([params[0][0].shape[0]] + [w.shape[1] for w, _ in params])
    dims_p = tuple([dims[0]] + [_round_up(d, 128) for d in dims[1:]])
    flat = []
    for i, (w, b) in enumerate(params):
        flat.append(_pad2d(w, (dims_p[i], dims_p[i + 1])).astype(weight_dtype))
        flat.append(_pad2d(b, (1, dims_p[i + 1])).astype(jnp.float32))
    return tuple(flat), dims, dims_p


def predict_net_forward(x, flat_params, *, dims, dims_p, batch_tile=None):
    """y = sigmoid( relu(W_n(... relu(W_1 x + b_1) ...) + b_n) )  -- one fused
    pallas_call. `flat_params` must come from prepare_predict_net_params."""
    B, Din = x.shape
    assert Din == dims[0]
    n_layers = len(dims) - 1
    kernel = functools.partial(_fused_mlp_kernel, n_layers=n_layers)

    flops = sum(2 * B * dims_p[i] * dims_p[i + 1] for i in range(n_layers))
    bytes_accessed = (
        x.size * x.dtype.itemsize
        + sum(a.size * a.dtype.itemsize for a in flat_params)
        + B * dims_p[-1] * x.dtype.itemsize
    )
    cost = pl.CostEstimate(
        flops=flops, transcendentals=B * dims_p[-1], bytes_accessed=bytes_accessed
    )

    if batch_tile is None or B <= batch_tile:
        # Gridless, fully VMEM-resident path (right shape for tiny MLPs).
        out_p = pl.pallas_call(
            kernel,
            out_shape=jax.ShapeDtypeStruct((B, dims_p[-1]), x.dtype),
            in_specs=[pl.BlockSpec(memory_space=pltpu.MemorySpace.VMEM)]
            * (1 + 2 * n_layers),
            out_specs=pl.BlockSpec(memory_space=pltpu.MemorySpace.VMEM),
            cost_estimate=cost,
        )(x, *flat_params)
        return out_p[:, : dims[-1]]

    # Batch-tiled path for non-trivial batches: grid over M, params stay
    # VMEM-resident (constant index_maps). "parallel" lets v7x's 2 TCs split it.
    TM = batch_tile
    Bp = _round_up(B, TM)
    xp = jnp.pad(x, ((0, Bp - B), (0, 0)))
    in_specs = [pl.BlockSpec((TM, dims[0]), lambda i: (i, 0))]
    for li in range(n_layers):
        in_specs.append(
            pl.BlockSpec((dims_p[li], dims_p[li + 1]), lambda i: (0, 0))
        )
        in_specs.append(pl.BlockSpec((1, dims_p[li + 1]), lambda i: (0, 0)))
    out_p = pl.pallas_call(
        kernel,
        out_shape=jax.ShapeDtypeStruct((Bp, dims_p[-1]), x.dtype),
        grid=(Bp // TM,),
        in_specs=in_specs,
        out_specs=pl.BlockSpec((TM, dims_p[-1]), lambda i: (i, 0)),
        cost_estimate=cost,
        compiler_params=pltpu.CompilerParams(dimension_semantics=("parallel",)),
    )(xp, *flat_params)
    return out_p[:B, : dims[-1]]


def _reference(x, params):
    # precision=HIGHEST so the f32 reference matmul doesn't silently run at
    # reduced (bf16-pass) precision on TPU.
    y = x
    for w, b in params:
        y = jnp.maximum(
            jnp.dot(y, w, precision=jax.lax.Precision.HIGHEST) + b, 0.0
        )
    return jax.nn.sigmoid(y)


if __name__ == "__main__":
    neure_num = [32, 64, 16]   # cfg: in_dim=32, hidden=64, out=16
    batch = 8

    key = jax.random.PRNGKey(0)
    key, kx = jax.random.split(key)
    x = jax.random.normal(kx, (batch, neure_num[0]), jnp.float32)
    params = init_predict_net_params(key, neure_num)

    # One-time parameter prep (the per-call pads are gone from the forward).
    flat, dims, dims_p = prepare_predict_net_params(params)  # f32; bf16 at scale

    fwd = jax.jit(functools.partial(predict_net_forward, dims=dims, dims_p=dims_p))
    y = jax.block_until_ready(fwd(x, flat))
    y_ref = _reference(x, params)
    assert y.shape == (batch, neure_num[-1])
    assert jnp.allclose(y, y_ref, atol=1e-5, rtol=1e-5)

    # Also exercise the batch-tiled (megacore-friendly) path on a larger batch.
    xb = jax.random.normal(jax.random.PRNGKey(1), (512, neure_num[0]), jnp.float32)
    fwd_tiled = jax.jit(
        functools.partial(
            predict_net_forward, dims=dims, dims_p=dims_p, batch_tile=256
        )
    )
    yb = jax.block_until_ready(fwd_tiled(xb, flat))
    assert jnp.allclose(yb, _reference(xb, params), atol=1e-5, rtol=1e-5)

    print("KERNEL_OK")
</pallas_src>

<mosaic_0001>
module attributes {stable_mosaic.version = 11 : i64} {
  func.func @_fused_mlp_kernel(%arg0: memref<8x32xf32, #tpu.memory_space<vmem>>, %arg1: memref<32x128xf32, #tpu.memory_space<vmem>>, %arg2: memref<1x128xf32, #tpu.memory_space<vmem>>, %arg3: memref<128x128xf32, #tpu.memory_space<vmem>>, %arg4: memref<1x128xf32, #tpu.memory_space<vmem>>, %arg5: memref<8x128xf32, #tpu.memory_space<vmem>>) attributes {dimension_semantics = [], scalar_prefetch = 0 : i64, scratch_operands = 0 : i64, tpu.core_type = #tpu.core_type<tc>} {
    %c0 = arith.constant 0 : index
    %c0_0 = arith.constant 0 : index
    %0 = vector.load %arg0[%c0, %c0_0] : memref<8x32xf32, #tpu.memory_space<vmem>>, vector<8x32xf32>
    %c0_1 = arith.constant 0 : index
    %c0_2 = arith.constant 0 : index
    %1 = vector.load %arg1[%c0_1, %c0_2] : memref<32x128xf32, #tpu.memory_space<vmem>>, vector<32x128xf32>
    %c0_3 = arith.constant 0 : index
    %c0_4 = arith.constant 0 : index
    %2 = vector.load %arg2[%c0_3, %c0_4] : memref<1x128xf32, #tpu.memory_space<vmem>>, vector<1x128xf32>
    %cst = arith.constant dense<0.000000e+00> : vector<8x128xf32>
    %3 = tpu.matmul %0, %1, %cst {dimension_numbers = #tpu.dot_dimension_numbers<[1], [0], [0], [1], [0, 0, 1, 1], [], []>} : vector<8x32xf32>, vector<32x128xf32>, vector<8x128xf32> -> vector<8x128xf32>
    %4 = vector.broadcast %2 : vector<1x128xf32> to vector<8x128xf32>
    %5 = arith.addf %3, %4 : vector<8x128xf32>
    %cst_5 = arith.constant 0.000000e+00 : f32
    %6 = vector.broadcast %cst_5 : f32 to vector<8x128xf32>
    %7 = arith.maximumf %5, %6 : vector<8x128xf32>
    %c0_6 = arith.constant 0 : index
    %c0_7 = arith.constant 0 : index
    %8 = vector.load %arg3[%c0_6, %c0_7] : memref<128x128xf32, #tpu.memory_space<vmem>>, vector<128x128xf32>
    %c0_8 = arith.constant 0 : index
    %c0_9 = arith.constant 0 : index
    %9 = vector.load %arg4[%c0_8, %c0_9] : memref<1x128xf32, #tpu.memory_space<vmem>>, vector<1x128xf32>
    %cst_10 = arith.constant dense<0.000000e+00> : vector<8x128xf32>
    %10 = tpu.matmul %7, %8, %cst_10 {dimension_numbers = #tpu.dot_dimension_numbers<[1], [0], [0], [1], [0, 0, 1, 1], [], []>} : vector<8x128xf32>, vector<128x128xf32>, vector<8x128xf32> -> vector<8x128xf32>
    %11 = vector.broadcast %9 : vector<1x128xf32> to vector<8x128xf32>
    %12 = arith.addf %10, %11 : vector<8x128xf32>
    %cst_11 = arith.constant 0.000000e+00 : f32
    %13 = vector.broadcast %cst_11 : f32 to vector<8x128xf32>
    %14 = arith.maximumf %12, %13 : vector<8x128xf32>
    %cst_12 = arith.constant 5.000000e-01 : f32
    %15 = vector.broadcast %cst_12 : f32 to vector<8x128xf32>
    %16 = arith.mulf %15, %14 : vector<8x128xf32>
    %17 = math.tanh %16 : vector<8x128xf32>
    %cst_13 = arith.constant 1.000000e+00 : f32
    %18 = vector.broadcast %cst_13 : f32 to vector<8x128xf32>
    %19 = arith.addf %18, %17 : vector<8x128xf32>
    %cst_14 = arith.constant 5.000000e-01 : f32
    %20 = vector.broadcast %cst_14 : f32 to vector<8x128xf32>
    %21 = arith.mulf %20, %19 : vector<8x128xf32>
    %c0_15 = arith.constant 0 : index
    %c0_16 = arith.constant 0 : index
    %22 = vector.load %arg5[%c0_15, %c0_16] : memref<8x128xf32, #tpu.memory_space<vmem>>, vector<8x128xf32>
    tpu.vector_store %arg5[%c0_15, %c0_16], %21 {strides = array<i32>} : memref<8x128xf32, #tpu.memory_space<vmem>>, vector<8x128xf32>,
    return
  }
}

</mosaic_0001>

<llo_original>
// kernel: predict_net_forward.1
$region0: #{predict_net_forward.1}
  #allocation0 [shape = 'u32[]', space=smem, size = 0x4, offset = 0x4, fixed_abs, tag = 'smem constant byte address 0x4 - core index']
  #allocation1 [shape = 'u32[144,128]{1,0:T(1,128)}', space=vmem, size = 0x12000, scoped, tag = 'internal scratch']
  %s0 = inlined_call_operand.hbm [shape: f32[8,32], index: 0, kind: input, shape index: {}]
  %s1 = inlined_call_operand.hbm [shape: f32[32,128], index: 1, kind: input, shape index: {}]
  %s2 = inlined_call_operand.vmem [shape: f32[1,128], index: 2, kind: input, shape index: {}]
  %s3 = inlined_call_operand.hbm [shape: f32[128,128], index: 3, kind: input, shape index: {}]
  %s4 = inlined_call_operand.vmem [shape: f32[1,128], index: 4, kind: input, shape index: {}]
  %s5 = inlined_call_operand.hbm [shape: f32[8,128], index: 5, kind: output, shape index: {}]
  %s6 = sld [smem:[#allocation0]]
  $region42: #{predict_net_forward.1} parent=0
    _
  %s8 = ssub.s32 1, %s6
  %s9 = scalar_select 0, %s8, %s6
  $region1: #{predict_net_forward.1} parent=0
    #allocation2 [shape = 'u8[4096]{0}', space=vmem, size = 0x1000, scoped, tag = 'input window, operand 0, single buffered']
    #allocation3 [shape = 's32[1]{0}', space=sflag, size = 0x4, scoped, tag = 'scoped memory for predict_net_forward.1']
    #allocation4 [shape = 's32[1]{0}', space=sflag, size = 0x4, scoped, tag = 'scoped memory for predict_net_forward.1']
    #allocation5 [shape = 'u8[16384]{0}', space=vmem, size = 0x4000, scoped, tag = 'input window, operand 1, single buffered']
    #allocation6 [shape = 's32[1]{0}', space=sflag, size = 0x4, scoped, tag = 'scoped memory for predict_net_forward.1']
    #allocation7 [shape = 'u8[65536]{0}', space=vmem, size = 0x10000, scoped, tag = 'input window, operand 3, single buffered']
    #allocation8 [shape = 'u8[4096]{0}', space=vmem, size = 0x1000, scoped, tag = 'output window, operand 0, single buffered']
    %10 = vsyncpa [#allocation3], 0
    %11 = vsyncpa [#allocation6], 0
    %12 = vsyncpa [#allocation4], 0
    // Predicated region
    $region2: #{predict_net_forward.1} parent=1 // pred_check
      _
    $region3: #{predict_net_forward.1} parent=1 // pred_check_branch
      %14 = sbr.rel (0) target = $region5
    $region4: #{predict_net_forward.1} parent=1 // pred_region
      %s16 = ssub.s32 128, 128
      %17 = vsyncadd [#allocation3], %s16
      %s19 = sshll.u32 [#allocation2], 4
      %s20 = int_to_ptr.vmem [resolvable:$true] %s19
      %22 = dma.hbm_to_vmem [thread:$0]  %s0, 128, %s20, [#allocation3]
    $region5: #{predict_net_forward.1} parent=1 // pred_fallthru
      _
    // Predicated region
    $region6: #{predict_net_forward.1} parent=1 // pred_check
      _
    $region7: #{predict_net_forward.1} parent=1 // pred_check_branch
      %24 = sbr.rel (0) target = $region9
    $region8: #{predict_net_forward.1} parent=1 // pred_region
      %s26 = ssub.s32 512, 512
      %27 = vsyncadd [#allocation6], %s26
      %s28 = sshll.u32 [#allocation5], 4
      %s29 = int_to_ptr.vmem [resolvable:$true] %s28
      %34 = dma.hbm_to_vmem [thread:$0]  %s1, 512, %s29, [#allocation6], 128, 128, 8
    $region9: #{predict_net_forward.1} parent=1 // pred_fallthru
      _
    // Predicated region
    $region10: #{predict_net_forward.1} parent=1 // pred_check
      _
    $region11: #{predict_net_forward.1} parent=1 // pred_check_branch
      %36 = sbr.rel (0) target = $region13
    $region12: #{predict_net_forward.1} parent=1 // pred_region
      _
    $region13: #{predict_net_forward.1} parent=1 // pred_fallthru
      _
    // Predicated region
    $region14: #{predict_net_forward.1} parent=1 // pred_check
      _
    $region15: #{predict_net_forward.1} parent=1 // pred_check_branch
      %38 = sbr.rel (0) target = $region17
    $region16: #{predict_net_forward.1} parent=1 // pred_region
      %s40 = ssub.s32 2048, 2048
      %41 = vsyncadd [#allocation6], %s40
      %s42 = sshll.u32 [#allocation7], 4
      %s43 = int_to_ptr.vmem [resolvable:$true] %s42
      %48 = dma.hbm_to_vmem [thread:$0]  %s3, 2048, %s43, [#allocation6], 128, 128, 8
    $region17: #{predict_net_forward.1} parent=1 // pred_fallthru
      _
    // Predicated region
    $region18: #{predict_net_forward.1} parent=1 // pred_check
      _
    $region19: #{predict_net_forward.1} parent=1 // pred_check_branch
      %50 = sbr.rel (0) target = $region21
    $region20: #{predict_net_forward.1} parent=1 // pred_region
      _
    $region21: #{predict_net_forward.1} parent=1 // pred_fallthru
      _
    // Predicated region
    $region22: #{predict_net_forward.1} parent=1 // pred_check
      _
    $region23: #{predict_net_forward.1} parent=1 // pred_check_branch
      %52 = sbr.rel (0) target = $region25
    $region24: #{predict_net_forward.1} parent=1 // pred_region
      %53 = dma.done [#allocation3], 128
    $region25: #{predict_net_forward.1} parent=1 // pred_fallthru
      _
    // Predicated region
    $region26: #{predict_net_forward.1} parent=1 // pred_check
      _
    $region27: #{predict_net_forward.1} parent=1 // pred_check_branch
      %55 = sbr.rel (0) target = $region29
    $region28: #{predict_net_forward.1} parent=1 // pred_region
      %56 = dma.done [#allocation6], 512
    $region29: #{predict_net_forward.1} parent=1 // pred_fallthru
      _
    // Predicated region
    $region30: #{predict_net_forward.1} parent=1 // pred_check
      _
    $region31: #{predict_net_forward.1} parent=1 // pred_check_branch
      %58 = sbr.rel (0) target = $region33
    $region32: #{predict_net_forward.1} parent=1 // pred_region
      %59 = dma.done [#allocation6], 2048
    $region33: #{predict_net_forward.1} parent=1 // pred_fallthru
      _
    %v60 = vld [vmem:[#allocation2] sm:$0xff]
    %v61 = vld [vmem:[#allocation5] sm:$0xff]
    %v62 = vld [vmem:[#allocation5 + $0x8] sm:$0xff]
    %v63 = vld [vmem:[#allocation5 + $0x10] sm:$0xff]
    %v64 = vld [vmem:[#allocation5 + $0x18] sm:$0xff]
    %v65 = vld [vmem:[%s2] sm:$0x1]
    %v67 = vlaneseq
    %v68 = vshrl.u32 %v67, 7
    %v69 = vsub.s32 0, %v68
    %v70 = vrot.slane %v65, %v69
    %vm72 = vcmask 261120
    %v74 = vsel %vm72, %v60, 0
    %76 = vmatprep.subr.mxu0 0.0
    %77 = vmatpush1.msra.mxu0 %v61
    %78 = vmatprep.subr.mxu0 0.0
    %79 = vmatpush1.msra.mxu0 %v62
    %80 = vmatprep.subr.mxu0 0.0
    %81 = vmatpush1.msra.mxu0 %v63
    %82 = vmatprep.subr.mxu0 0.0
    %83 = vmatpush1.msra.mxu0 %v64
    %84 = vmatprep.subr.mxu0 0.0
    %85 = vmatpush1.msra.mxu0 0.0
    %86 = vmatprep.subr.mxu0 0.0
    %87 = vmatpush1.msra.mxu0 0.0
    %88 = vmatprep.subr.mxu0 0.0
    %89 = vmatpush1.msra.mxu0 0.0
    %90 = vmatprep.subr.mxu0 0.0
    %91 = vmatpush1.msra.mxu0 0.0
    %92 = vmatprep.subr.mxu0 0.0
    %93 = vmatpush1.msra.mxu0 0.0
    %94 = vmatprep.subr.mxu0 0.0
    %95 = vmatpush1.msra.mxu0 0.0
    %96 = vmatprep.subr.mxu0 0.0
    %97 = vmatpush1.msra.mxu0 0.0
    %98 = vmatprep.subr.mxu0 0.0
    %99 = vmatpush1.msra.mxu0 0.0
    %100 = vmatprep.subr.mxu0 0.0
    %101 = vmatpush1.msra.mxu0 0.0
    %102 = vmatprep.subr.mxu0 0.0
    %103 = vmatpush1.msra.mxu0 0.0
    %104 = vmatprep.subr.mxu0 0.0
    %105 = vmatpush1.msra.mxu0 0.0
    %106 = vmatprep.subr.mxu0 0.0
    %107 = vmatpush1.msra.mxu0 0.0
    %108 = vmatprep.subr.mxu0 0.0
    %109 = vmatpush1.msra.mxu0 0.0
    %110 = vmatprep.subr.mxu0 0.0
    %111 = vmatpush1.msra.mxu0 0.0
    %112 = vmatprep.subr.mxu0 0.0
    %113 = vmatpush1.msra.mxu0 0.0
    %114 = vmatprep.subr.mxu0 0.0
    %115 = vmatpush1.msra.mxu0 0.0
    %116 = vmatprep.subr.mxu0 0.0
    %117 = vmatpush1.msra.mxu0 0.0
    %118 = vmatprep.subr.mxu0 0.0
    %119 = vmatpush1.msra.mxu0 0.0
    %120 = vmatprep.subr.mxu0 0.0
    %121 = vmatpush1.msra.mxu0 0.0
    %122 = vmatprep.subr.mxu0 0.0
    %123 = vmatpush1.msra.mxu0 0.0
    %124 = vmatprep.subr.mxu0 0.0
    %125 = vmatpush1.msra.mxu0 0.0
    %126 = vmatprep.subr.mxu0 0.0
    %127 = vmatpush1.msra.mxu0 0.0
    %128 = vmatprep.subr.mxu0 0.0
    %129 = vmatpush1.msra.mxu0 0.0
    %130 = vmatprep.subr.mxu0 0.0
    %131 = vmatpush1.msra.mxu0 0.0
    %132 = vmatprep.subr.mxu0 0.0
    %133 = vmatpush1.msra.mxu0 0.0
    %134 = vmatprep.subr.mxu0 0.0
    %135 = vmatpush1.msra.mxu0 0.0
    %136 = vmatprep.subr.mxu0 0.0
    %137 = vmatpush1.msra.mxu0 0.0
    %138 = vmatprep.subr.mxu0 0.0
    %139 = vmatpush1.msra.mxu0 0.0
    %140 = vmatprep.mubr.f32.mxu0 0.0
    %141 = vmatmul.mubr.f32.gmra.mrb[0].mxu0 %v74
    %v142 = vpop.f32.mrb[0].mxu0
    %v143 = vadd.f32 %v70, %v142
    %v144 = vpop.f32.mrb[0].mxu0
    %145 = vdwg.mxu0
    %v146 = vmax.f32 %v143, 0.0
    %v147 = vld [vmem:[#allocation7] sm:$0xff]
    %v148 = vld [vmem:[#allocation7 + $0x8] sm:$0xff]
    %v149 = vld [vmem:[#allocation7 + $0x10] sm:$0xff]
    %v150 = vld [vmem:[#allocation7 + $0x18] sm:$0xff]
    %v151 = vld [vmem:[#allocation7 + $0x20] sm:$0xff]
    %v152 = vld [vmem:[#allocation7 + $0x28] sm:$0xff]
    %v153 = vld [vmem:[#allocation7 + $0x30] sm:$0xff]
    %v154 = vld [vmem:[#allocation7 + $0x38] sm:$0xff]
    %v155 = vld [vmem:[#allocation7 + $0x40] sm:$0xff]
    %v156 = vld [vmem:[#allocation7 + $0x48] sm:$0xff]
    %v157 = vld [vmem:[#allocation7 + $0x50] sm:$0xff]
    %v158 = vld [vmem:[#allocation7 + $0x58] sm:$0xff]
    %v159 = vld [vmem:[#allocation7 + $0x60] sm:$0xff]
    %v160 = vld [vmem:[#allocation7 + $0x68] sm:$0xff]
    %v161 = vld [vmem:[#allocation7 + $0x70] sm:$0xff]
    %v162 = vld [vmem:[#allocation7 + $0x78] sm:$0xff]
    %v163 = vld [vmem:[%s4] sm:$0x1]
    %v165 = vlaneseq
    %v166 = vshrl.u32 %v165, 7
    %v167 = vsub.s32 0, %v166
    %v168 = vrot.slane %v163, %v167
    %170 = vmatprep.subr.mxu0 0.0
    %171 = vmatpush1.msra.mxu0 %v147
    %172 = vmatprep.subr.mxu0 0.0
    %173 = vmatpush1.msra.mxu0 %v148
    %174 = vmatprep.subr.mxu0 0.0
    %175 = vmatpush1.msra.mxu0 %v149
    %176 = vmatprep.subr.mxu0 0.0
    %177 = vmatpush1.msra.mxu0 %v150
    %178 = vmatprep.subr.mxu0 0.0
    %179 = vmatpush1.msra.mxu0 %v151
    %180 = vmatprep.subr.mxu0 0.0
    %181 = vmatpush1.msra.mxu0 %v152
    %182 = vmatprep.subr.mxu0 0.0
    %183 = vmatpush1.msra.mxu0 %v153
    %184 = vmatprep.subr.mxu0 0.0
    %185 = vmatpush1.msra.mxu0 %v154
    %186 = vmatprep.subr.mxu0 0.0
    %187 = vmatpush1.msra.mxu0 %v155
    %188 = vmatprep.subr.mxu0 0.0
    %189 = vmatpush1.msra.mxu0 %v156
    %190 = vmatprep.subr.mxu0 0.0
    %191 = vmatpush1.msra.mxu0 %v157
    %192 = vmatprep.subr.mxu0 0.0
    %193 = vmatpush1.msra.mxu0 %v158
    %194 = vmatprep.subr.mxu0 0.0
    %195 = vmatpush1.msra.mxu0 %v159
    %196 = vmatprep.subr.mxu0 0.0
    %197 = vmatpush1.msra.mxu0 %v160
    %198 = vmatprep.subr.mxu0 0.0
    %199 = vmatpush1.msra.mxu0 %v161
    %200 = vmatprep.subr.mxu0 0.0
    %201 = vmatpush1.msra.mxu0 %v162
    %202 = vmatprep.subr.mxu0 0.0
    %203 = vmatpush1.msra.mxu0 0.0
    %204 = vmatprep.subr.mxu0 0.0
    %205 = vmatpush1.msra.mxu0 0.0
    %206 = vmatprep.subr.mxu0 0.0
    %207 = vmatpush1.msra.mxu0 0.0
    %208 = vmatprep.subr.mxu0 0.0
    %209 = vmatpush1.msra.mxu0 0.0
    %210 = vmatprep.subr.mxu0 0.0
    %211 = vmatpush1.msra.mxu0 0.0
    %212 = vmatprep.subr.mxu0 0.0
    %213 = vmatpush1.msra.mxu0 0.0
    %214 = vmatprep.subr.mxu0 0.0
    %215 = vmatpush1.msra.mxu0 0.0
    %216 = vmatprep.subr.mxu0 0.0
    %217 = vmatpush1.msra.mxu0 0.0
    %218 = vmatprep.subr.mxu0 0.0
    %219 = vmatpush1.msra.mxu0 0.0
    %220 = vmatprep.subr.mxu0 0.0
    %221 = vmatpush1.msra.mxu0 0.0
    %222 = vmatprep.subr.mxu0 0.0
    %223 = vmatpush1.msra.mxu0 0.0
    %224 = vmatprep.subr.mxu0 0.0
    %225 = vmatpush1.msra.mxu0 0.0
    %226 = vmatprep.subr.mxu0 0.0
    %227 = vmatpush1.msra.mxu0 0.0
    %228 = vmatprep.subr.mxu0 0.0
    %229 = vmatpush1.msra.mxu0 0.0
    %230 = vmatprep.subr.mxu0 0.0
    %231 = vmatpush1.msra.mxu0 0.0
    %232 = vmatprep.subr.mxu0 0.0
    %233 = vmatpush1.msra.mxu0 0.0
    %234 = vmatprep.mubr.f32.mxu0 0.0
    %235 = vmatmul.mubr.f32.gmra.mrb[0].mxu0 %v146
    %v236 = vpop.f32.mrb[0].mxu0
    %v237 = vadd.f32 %v168, %v236
    %v238 = vpop.f32.mrb[0].mxu0
    %239 = vdwg.mxu0
    %v240 = vmax.f32 %v237, 0.0
    %v241 = vmul.f32 %v240, 0.5
    %v242 = vtanh.pop %v241
    %v243 = vadd.f32 %v242, 1.0
    %v244 = vmul.f32 %v243, 0.5
    %245 = vst [vmem:[#allocation8] sm:$0xff] %v244
    // Predicated region
    $region34: #{predict_net_forward.1} parent=1 // pred_check
      _
    $region35: #{predict_net_forward.1} parent=1 // pred_check_branch
      %247 = sbr.rel (0) target = $region37
    $region36: #{predict_net_forward.1} parent=1 // pred_region
      %s249 = ssub.s32 128, 128
      %250 = vsyncadd [#allocation4], %s249
      %s252 = sshll.u32 [#allocation8], 4
      %s253 = int_to_ptr.vmem [resolvable:$true] %s252
      %255 = dma.vmem_to_hbm [thread:$0]  %s253, 128, %s5, [#allocation4]
    $region37: #{predict_net_forward.1} parent=1 // pred_fallthru
      _
    // Predicated region
    $region38: #{predict_net_forward.1} parent=1 // pred_check
      _
    $region39: #{predict_net_forward.1} parent=1 // pred_check_branch
      %257 = sbr.rel (0) target = $region41
    $region40: #{predict_net_forward.1} parent=1 // pred_region
      %258 = dma.done [#allocation4], 128
    $region41: #{predict_net_forward.1} parent=1 // pred_fallthru
      _
    %259 = vsyncpa [#allocation3], 1
    %260 = vsyncpa [#allocation6], 1
    %261 = vsyncpa [#allocation4], 1

</llo_original>
